<compile_context>
chip_gen: v7x
topology: tpu7x:2x2x1
jax: 0.10.0
libtpu: 0.0.40
codegen_flags: <defaults>
</compile_context>

<pallas_src>
import jax
import jax.numpy as jnp
import numpy as np
from jax.experimental import pallas as pl
from jax.experimental.pallas import tpu as pltpu


def _round_up(x, m):
    return ((x + m - 1) // m) * m


def _pick_tb(batch, seq, hidden, budget_bytes=32 << 20):
    """Largest batch tile that (a) divides `batch` (no host-side batch padding)
    and (b) keeps the per-step VMEM working set under `budget_bytes`."""
    s8 = _round_up(max(seq, 1), 8)          # sublane padding inside VMEM
    h128 = _round_up(max(hidden, 1), 128)   # lane padding inside VMEM
    per_row = (
        2 * s8 * h128 * 2                   # keys tile, bf16, double-buffered
        + 2 * s8 * h128 * 4                 # uk / tanh f32 temporaries
        + 2 * (h128 * 2 + h128 * 4 + _round_up(seq, 128) * 4)   # q / ctx / w
    )
    cap = max(1, min(batch, 256, budget_bytes // max(per_row, 1)))
    tb = int(cap)
    while batch % tb:
        tb -= 1
    return tb


def _make_kernel(tb):
    def kernel(q_ref, k_ref, waT_ref, uaT_ref, bias_ref, vaw_ref,
               ctx_ref, w_ref):
        # q_ref:   (TB, 1, H) bf16        k_ref: (TB, S, H) bf16
        # waT/uaT: (H, H)     bf16  (pre-transposed on host: y = x @ W.T)
        # bias:    (1, H)     f32   (wa_b + ua_b, added once)
        # vaw:     (1, H)     f32   (Va weight row; Va bias is a softmax no-op)
        _, s, h = k_ref.shape

        keys = k_ref[...]                                         # (TB,S,H) bf16

        # Ua projection: ONE (TB*S, H) @ (H, H) MXU matmul, f32 accumulation.
        uk = jnp.dot(keys.reshape(tb * s, h), uaT_ref[...],
                     preferred_element_type=jnp.float32)          # (TB*S, H)
        uk3 = uk.reshape(tb, s, h)                                # (TB, S, H)

        # Wa projection for all TB query rows at once (M = TB, not TB x M=1).
        wq = jnp.dot(q_ref[...].reshape(tb, h), waT_ref[...],
                     preferred_element_type=jnp.float32) + bias_ref[...]

        # Batched tanh over the whole tile (single EUP pass).
        t3 = jnp.tanh(uk3 + wq[:, None, :])                       # (TB,S,H) f32

        vaw = vaw_ref[...]                                        # (1, H) f32
        for b in range(tb):     # tiny per-row tail; heavy work batched above
            # Scores as a lane-dense (1, S) row: contract H of (1,H) vs (S,H).
            s_b = jax.lax.dot_general(
                vaw, t3[b], (((1,), (1,)), ((), ())),
                preferred_element_type=jnp.float32)               # (1, S)

            # Softmax over the sequence axis, f32 throughout.
            m = jnp.max(s_b, axis=-1, keepdims=True)
            e = jnp.exp(s_b - m)
            den = jnp.sum(e, axis=-1, keepdims=True)
            inv = pl.reciprocal(den, approx=True)
            inv = inv * (2.0 - den * inv)     # one Newton step -> f32 accuracy
            w_b = e * inv                                         # (1, S) f32

            # context = weights @ keys   (bf16 MXU inputs, f32 accumulation).
            ctx_b = jnp.dot(w_b.astype(keys.dtype), k_ref[b],
                            preferred_element_type=jnp.float32)   # (1, H)

            ctx_ref[b] = ctx_b.astype(ctx_ref.dtype)
            w_ref[b] = w_b.astype(w_ref.dtype)

    return kernel


@jax.jit
def bahdanau_attention(query, keys, wa_w, wa_b, ua_w, ua_b, va_w, va_b):
    """query: (B,1,H), keys: (B,S,H). Returns (context (B,1,H), weights (B,1,S))."""
    del va_b  # softmax shift invariance: Va bias cannot change either output
    B, _, H = query.shape
    _, S, _ = keys.shape
    TB = _pick_tb(B, S, H)

    bf16, f32 = jnp.bfloat16, jnp.float32
    q3 = query.astype(bf16)                          # (B,1,H)
    k3 = keys.astype(bf16)                           # (B,S,H)
    # nn.Linear: y = x @ W.T + b -> transpose once on the host, bf16 MXU input.
    waT = wa_w.T.astype(bf16)                        # (H,H)
    uaT = ua_w.T.astype(bf16)                        # (H,H)
    bias = (wa_b + ua_b).astype(f32).reshape(1, H)   # added once to Wa(q)
    vaw = va_w.astype(f32).reshape(1, H)

    grid_spec = pltpu.PrefetchScalarGridSpec(
        num_scalar_prefetch=0,
        grid=(B // TB,),
        in_specs=[
            pl.BlockSpec((TB, 1, H), lambda b: (b, 0, 0)),   # query
            pl.BlockSpec((TB, S, H), lambda b: (b, 0, 0)),   # keys
            pl.BlockSpec((H, H), lambda b: (0, 0)),          # Wa^T (resident)
            pl.BlockSpec((H, H), lambda b: (0, 0)),          # Ua^T (resident)
            pl.BlockSpec((1, H), lambda b: (0, 0)),          # wa_b + ua_b
            pl.BlockSpec((1, H), lambda b: (0, 0)),          # Va weight row
        ],
        out_specs=[
            pl.BlockSpec((TB, 1, H), lambda b: (b, 0, 0)),   # context
            pl.BlockSpec((TB, 1, S), lambda b: (b, 0, 0)),   # weights
        ],
    )

    cost = pl.CostEstimate(
        flops=int(2 * B * S * H * H + 2 * B * H * H + 4 * B * S * H),
        transcendentals=int(B * S * H + B * S + B),
        bytes_accessed=int(2 * (B * S * H + B * H + 2 * H * H + 2 * H)
                           + 4 * (B * H + B * S)),
    )

    ctx, w = pl.pallas_call(
        _make_kernel(TB),
        out_shape=(
            jax.ShapeDtypeStruct((B, 1, H), f32),
            jax.ShapeDtypeStruct((B, 1, S), f32),
        ),
        grid_spec=grid_spec,
        compiler_params=pltpu.CompilerParams(
            dimension_semantics=("parallel",),
            vmem_limit_bytes=48 * 1024 * 1024),
        cost_estimate=cost,
    )(q3, k3, waT, uaT, bias, vaw)
    return ctx, w


def _reference(query, keys, wa_w, wa_b, ua_w, ua_b, va_w, va_b):
    wq = query @ wa_w.T + wa_b                    # (B,1,H)
    uk = keys @ ua_w.T + ua_b                     # (B,S,H)
    scores = jnp.tanh(wq + uk) @ va_w.T + va_b    # (B,S,1)
    scores = jnp.transpose(scores, (0, 2, 1))     # (B,1,S)
    weights = jax.nn.softmax(scores, axis=-1)
    context = weights @ keys                      # (B,1,H)
    return context, weights


if __name__ == "__main__":
    B, S, H = 2, 8, 32
    key = jax.random.PRNGKey(0)
    k_q, k_k, k_w1, k_b1, k_w2, k_b2, k_w3, k_b3 = jax.random.split(key, 8)

    query = jax.random.normal(k_q, (B, 1, H), dtype=jnp.float32)
    keys = jax.random.normal(k_k, (B, S, H), dtype=jnp.float32)

    # Deterministic parameter init (shapes follow nn.Linear(H,H), nn.Linear(H,1)).
    bound = 1.0 / np.sqrt(H)
    wa_w = jax.random.uniform(k_w1, (H, H), jnp.float32, -bound, bound)
    wa_b = jax.random.uniform(k_b1, (H,), jnp.float32, -bound, bound)
    ua_w = jax.random.uniform(k_w2, (H, H), jnp.float32, -bound, bound)
    ua_b = jax.random.uniform(k_b2, (H,), jnp.float32, -bound, bound)
    va_w = jax.random.uniform(k_w3, (1, H), jnp.float32, -bound, bound)
    va_b = jax.random.uniform(k_b3, (1,), jnp.float32, -bound, bound)

    ctx, w = bahdanau_attention(query, keys, wa_w, wa_b, ua_w, ua_b, va_w, va_b)
    jax.block_until_ready((ctx, w))

    ctx_ref, w_ref = _reference(query, keys, wa_w, wa_b, ua_w, ua_b, va_w, va_b)
    assert ctx.shape == (B, 1, H) and w.shape == (B, 1, S)
    # bf16 keys/query/weight-matrix MXU inputs -> ~1e-3 absolute error budget.
    assert np.allclose(np.asarray(ctx), np.asarray(ctx_ref), atol=2e-2, rtol=2e-2)
    assert np.allclose(np.asarray(w), np.asarray(w_ref), atol=2e-2, rtol=2e-2)

    print("KERNEL_OK")
</pallas_src>

<mosaic_0001>
module attributes {stable_mosaic.version = 11 : i64} {
  func.func @kernel(%arg0: i32, %arg1: memref<2x1x32xbf16, #tpu.memory_space<vmem>>, %arg2: memref<2x8x32xbf16, #tpu.memory_space<vmem>>, %arg3: memref<32x32xbf16, #tpu.memory_space<vmem>>, %arg4: memref<32x32xbf16, #tpu.memory_space<vmem>>, %arg5: memref<1x32xf32, #tpu.memory_space<vmem>>, %arg6: memref<1x32xf32, #tpu.memory_space<vmem>>, %arg7: memref<2x1x32xf32, #tpu.memory_space<vmem>>, %arg8: memref<2x1x8xf32, #tpu.memory_space<vmem>>) attributes {dimension_semantics = [#tpu.dimension_semantics<parallel>], iteration_bounds = array<i64: 1>, scalar_prefetch = 0 : i64, scratch_operands = 0 : i64, tpu.core_type = #tpu.core_type<tc>, window_params = [{transform_indices = @transform_0, window_bounds = array<i64: 2, 1, 32>}, {transform_indices = @transform_1, window_bounds = array<i64: 2, 8, 32>}, {pipeline_mode = #tpu.pipeline_mode<synchronous>, transform_indices = @transform_2, window_bounds = array<i64: 32, 32>}, {pipeline_mode = #tpu.pipeline_mode<synchronous>, transform_indices = @transform_3, window_bounds = array<i64: 32, 32>}, {pipeline_mode = #tpu.pipeline_mode<synchronous>, transform_indices = @transform_4, window_bounds = array<i64: 1, 32>}, {pipeline_mode = #tpu.pipeline_mode<synchronous>, transform_indices = @transform_5, window_bounds = array<i64: 1, 32>}, {transform_indices = @transform_6, window_bounds = array<i64: 2, 1, 32>}, {transform_indices = @transform_7, window_bounds = array<i64: 2, 1, 8>}]} {
    %c0 = arith.constant 0 : index
    %c0_0 = arith.constant 0 : index
    %c0_1 = arith.constant 0 : index
    %0 = vector.load %arg2[%c0, %c0_0, %c0_1] : memref<2x8x32xbf16, #tpu.memory_space<vmem>>, vector<2x8x32xbf16>
    %1 = vector.shape_cast %0 : vector<2x8x32xbf16> to vector<16x32xbf16>
    %c0_2 = arith.constant 0 : index
    %c0_3 = arith.constant 0 : index
    %2 = vector.load %arg4[%c0_2, %c0_3] : memref<32x32xbf16, #tpu.memory_space<vmem>>, vector<32x32xbf16>
    %cst = arith.constant dense<0.000000e+00> : vector<16x32xf32>
    %3 = tpu.matmul %1, %2, %cst {dimension_numbers = #tpu.dot_dimension_numbers<[1], [0], [0], [1], [0, 0, 1, 1], [], []>} : vector<16x32xbf16>, vector<32x32xbf16>, vector<16x32xf32> -> vector<16x32xf32>
    %4 = vector.shape_cast %3 : vector<16x32xf32> to vector<2x8x32xf32>
    %c0_4 = arith.constant 0 : index
    %c0_5 = arith.constant 0 : index
    %c0_6 = arith.constant 0 : index
    %5 = vector.load %arg1[%c0_4, %c0_5, %c0_6] : memref<2x1x32xbf16, #tpu.memory_space<vmem>>, vector<2x1x32xbf16>
    %6 = vector.shape_cast %5 : vector<2x1x32xbf16> to vector<2x32xbf16>
    %c0_7 = arith.constant 0 : index
    %c0_8 = arith.constant 0 : index
    %7 = vector.load %arg3[%c0_7, %c0_8] : memref<32x32xbf16, #tpu.memory_space<vmem>>, vector<32x32xbf16>
    %cst_9 = arith.constant dense<0.000000e+00> : vector<2x32xf32>
    %8 = tpu.matmul %6, %7, %cst_9 {dimension_numbers = #tpu.dot_dimension_numbers<[1], [0], [0], [1], [0, 0, 1, 1], [], []>} : vector<2x32xbf16>, vector<32x32xbf16>, vector<2x32xf32> -> vector<2x32xf32>
    %c0_10 = arith.constant 0 : index
    %c0_11 = arith.constant 0 : index
    %9 = vector.load %arg5[%c0_10, %c0_11] : memref<1x32xf32, #tpu.memory_space<vmem>>, vector<1x32xf32>
    %10 = vector.broadcast %9 : vector<1x32xf32> to vector<2x32xf32>
    %11 = arith.addf %8, %10 : vector<2x32xf32>
    %12 = vector.shape_cast %11 : vector<2x32xf32> to vector<2x1x32xf32>
    %13 = vector.broadcast %12 : vector<2x1x32xf32> to vector<2x8x32xf32>
    %14 = arith.addf %4, %13 : vector<2x8x32xf32>
    %15 = math.tanh %14 : vector<2x8x32xf32>
    %c0_12 = arith.constant 0 : index
    %c0_13 = arith.constant 0 : index
    %16 = vector.load %arg6[%c0_12, %c0_13] : memref<1x32xf32, #tpu.memory_space<vmem>>, vector<1x32xf32>
    %17 = vector.extract_strided_slice %15 {offsets = [0, 0, 0], sizes = [1, 8, 32], strides = [1, 1, 1]} : vector<2x8x32xf32> to vector<1x8x32xf32>
    %18 = vector.shape_cast %17 : vector<1x8x32xf32> to vector<8x32xf32>
    %cst_14 = arith.constant dense<0.000000e+00> : vector<1x8xf32>
    %19 = tpu.matmul %16, %18, %cst_14 {dimension_numbers = #tpu.dot_dimension_numbers<[1], [1], [0], [0], [0, 0, 1, 0], [], []>} : vector<1x32xf32>, vector<8x32xf32>, vector<1x8xf32> -> vector<1x8xf32>
    %cst_15 = arith.constant dense<0xFF800000> : vector<1xf32>
    %20 = vector.multi_reduction <maximumf>, %19, %cst_15 [1] : vector<1x8xf32> to vector<1xf32>
    %21 = vector.shape_cast %20 : vector<1xf32> to vector<1x1xf32>
    %22 = vector.broadcast %21 : vector<1x1xf32> to vector<1x8xf32>
    %23 = arith.subf %19, %22 : vector<1x8xf32>
    %24 = math.exp %23 : vector<1x8xf32>
    %cst_16 = arith.constant dense<0.000000e+00> : vector<1xf32>
    %25 = vector.multi_reduction <add>, %24, %cst_16 [1] : vector<1x8xf32> to vector<1xf32>
    %26 = vector.shape_cast %25 : vector<1xf32> to vector<1x1xf32>
    %27 = tpu.reciprocal %26 {approx = true} : vector<1x1xf32> -> vector<1x1xf32>
    %28 = arith.mulf %26, %27 : vector<1x1xf32>
    %cst_17 = arith.constant 2.000000e+00 : f32
    %29 = vector.broadcast %cst_17 : f32 to vector<1x1xf32>
    %30 = arith.subf %29, %28 : vector<1x1xf32>
    %31 = arith.mulf %27, %30 : vector<1x1xf32>
    %32 = vector.broadcast %31 : vector<1x1xf32> to vector<1x8xf32>
    %33 = arith.mulf %24, %32 : vector<1x8xf32>
    %34 = arith.truncf %33 : vector<1x8xf32> to vector<1x8xbf16>
    %c0_18 = arith.constant 0 : index
    %c0_19 = arith.constant 0 : index
    %c0_20 = arith.constant 0 : index
    %35 = vector.load %arg2[%c0_18, %c0_19, %c0_20] : memref<2x8x32xbf16, #tpu.memory_space<vmem>>, vector<1x8x32xbf16>
    %36 = vector.shape_cast %35 : vector<1x8x32xbf16> to vector<8x32xbf16>
    %cst_21 = arith.constant dense<0.000000e+00> : vector<1x32xf32>
    %37 = tpu.matmul %34, %36, %cst_21 {dimension_numbers = #tpu.dot_dimension_numbers<[1], [0], [0], [1], [0, 0, 1, 1], [], []>} : vector<1x8xbf16>, vector<8x32xbf16>, vector<1x32xf32> -> vector<1x32xf32>
    %c0_22 = arith.constant 0 : index
    %c0_23 = arith.constant 0 : index
    %c0_24 = arith.constant 0 : index
    %38 = vector.load %arg7[%c0_22, %c0_23, %c0_24] : memref<2x1x32xf32, #tpu.memory_space<vmem>>, vector<1x1x32xf32>
    %39 = vector.shape_cast %38 : vector<1x1x32xf32> to vector<1x32xf32>
    %40 = vector.shape_cast %37 : vector<1x32xf32> to vector<1x1x32xf32>
    tpu.vector_store %arg7[%c0_22, %c0_23, %c0_24], %40 {strides = array<i32>} : memref<2x1x32xf32, #tpu.memory_space<vmem>>, vector<1x1x32xf32>,
    %c0_25 = arith.constant 0 : index
    %c0_26 = arith.constant 0 : index
    %c0_27 = arith.constant 0 : index
    %41 = vector.load %arg8[%c0_25, %c0_26, %c0_27] : memref<2x1x8xf32, #tpu.memory_space<vmem>>, vector<1x1x8xf32>
    %42 = vector.shape_cast %41 : vector<1x1x8xf32> to vector<1x8xf32>
    %43 = vector.shape_cast %33 : vector<1x8xf32> to vector<1x1x8xf32>
    tpu.vector_store %arg8[%c0_25, %c0_26, %c0_27], %43 {strides = array<i32>} : memref<2x1x8xf32, #tpu.memory_space<vmem>>, vector<1x1x8xf32>,
    %44 = vector.extract_strided_slice %15 {offsets = [1, 0, 0], sizes = [1, 8, 32], strides = [1, 1, 1]} : vector<2x8x32xf32> to vector<1x8x32xf32>
    %45 = vector.shape_cast %44 : vector<1x8x32xf32> to vector<8x32xf32>
    %cst_28 = arith.constant dense<0.000000e+00> : vector<1x8xf32>
    %46 = tpu.matmul %16, %45, %cst_28 {dimension_numbers = #tpu.dot_dimension_numbers<[1], [1], [0], [0], [0, 0, 1, 0], [], []>} : vector<1x32xf32>, vector<8x32xf32>, vector<1x8xf32> -> vector<1x8xf32>
    %cst_29 = arith.constant dense<0xFF800000> : vector<1xf32>
    %47 = vector.multi_reduction <maximumf>, %46, %cst_29 [1] : vector<1x8xf32> to vector<1xf32>
    %48 = vector.shape_cast %47 : vector<1xf32> to vector<1x1xf32>
    %49 = vector.broadcast %48 : vector<1x1xf32> to vector<1x8xf32>
    %50 = arith.subf %46, %49 : vector<1x8xf32>
    %51 = math.exp %50 : vector<1x8xf32>
    %cst_30 = arith.constant dense<0.000000e+00> : vector<1xf32>
    %52 = vector.multi_reduction <add>, %51, %cst_30 [1] : vector<1x8xf32> to vector<1xf32>
    %53 = vector.shape_cast %52 : vector<1xf32> to vector<1x1xf32>
    %54 = tpu.reciprocal %53 {approx = true} : vector<1x1xf32> -> vector<1x1xf32>
    %55 = arith.mulf %53, %54 : vector<1x1xf32>
    %cst_31 = arith.constant 2.000000e+00 : f32
    %56 = vector.broadcast %cst_31 : f32 to vector<1x1xf32>
    %57 = arith.subf %56, %55 : vector<1x1xf32>
    %58 = arith.mulf %54, %57 : vector<1x1xf32>
    %59 = vector.broadcast %58 : vector<1x1xf32> to vector<1x8xf32>
    %60 = arith.mulf %51, %59 : vector<1x8xf32>
    %61 = arith.truncf %60 : vector<1x8xf32> to vector<1x8xbf16>
    %c1 = arith.constant 1 : index
    %c0_32 = arith.constant 0 : index
    %c0_33 = arith.constant 0 : index
    %62 = vector.load %arg2[%c1, %c0_32, %c0_33] : memref<2x8x32xbf16, #tpu.memory_space<vmem>>, vector<1x8x32xbf16>
    %63 = vector.shape_cast %62 : vector<1x8x32xbf16> to vector<8x32xbf16>
    %cst_34 = arith.constant dense<0.000000e+00> : vector<1x32xf32>
    %64 = tpu.matmul %61, %63, %cst_34 {dimension_numbers = #tpu.dot_dimension_numbers<[1], [0], [0], [1], [0, 0, 1, 1], [], []>} : vector<1x8xbf16>, vector<8x32xbf16>, vector<1x32xf32> -> vector<1x32xf32>
    %c1_35 = arith.constant 1 : index
    %c0_36 = arith.constant 0 : index
    %c0_37 = arith.constant 0 : index
    %65 = vector.load %arg7[%c1_35, %c0_36, %c0_37] : memref<2x1x32xf32, #tpu.memory_space<vmem>>, vector<1x1x32xf32>
    %66 = vector.shape_cast %65 : vector<1x1x32xf32> to vector<1x32xf32>
    %67 = vector.shape_cast %64 : vector<1x32xf32> to vector<1x1x32xf32>
    tpu.vector_store %arg7[%c1_35, %c0_36, %c0_37], %67 {strides = array<i32>} : memref<2x1x32xf32, #tpu.memory_space<vmem>>, vector<1x1x32xf32>,
    %c1_38 = arith.constant 1 : index
    %c0_39 = arith.constant 0 : index
    %c0_40 = arith.constant 0 : index
    %68 = vector.load %arg8[%c1_38, %c0_39, %c0_40] : memref<2x1x8xf32, #tpu.memory_space<vmem>>, vector<1x1x8xf32>
    %69 = vector.shape_cast %68 : vector<1x1x8xf32> to vector<1x8xf32>
    %70 = vector.shape_cast %60 : vector<1x8xf32> to vector<1x1x8xf32>
    tpu.vector_store %arg8[%c1_38, %c0_39, %c0_40], %70 {strides = array<i32>} : memref<2x1x8xf32, #tpu.memory_space<vmem>>, vector<1x1x8xf32>,
    return
  }
  func.func @transform_0(%arg0: i32) -> (i32, i32, i32) {
    %c0_i32 = arith.constant 0 : i32
    %c0_i32_0 = arith.constant 0 : i32
    %c0_i32_1 = arith.constant 0 : i32
    return %arg0, %c0_i32, %c0_i32_0 : i32, i32, i32
  }
  func.func @transform_1(%arg0: i32) -> (i32, i32, i32) {
    %c0_i32 = arith.constant 0 : i32
    %c0_i32_0 = arith.constant 0 : i32
    %c0_i32_1 = arith.constant 0 : i32
    return %arg0, %c0_i32, %c0_i32_0 : i32, i32, i32
  }
  func.func @transform_2(%arg0: i32) -> (i32, i32) {
    %c0_i32 = arith.constant 0 : i32
    %c0_i32_0 = arith.constant 0 : i32
    %c0_i32_1 = arith.constant 0 : i32
    return %c0_i32, %c0_i32_0 : i32, i32
  }
  func.func @transform_3(%arg0: i32) -> (i32, i32) {
    %c0_i32 = arith.constant 0 : i32
    %c0_i32_0 = arith.constant 0 : i32
    %c0_i32_1 = arith.constant 0 : i32
    return %c0_i32, %c0_i32_0 : i32, i32
  }
  func.func @transform_4(%arg0: i32) -> (i32, i32) {
    %c0_i32 = arith.constant 0 : i32
    %c0_i32_0 = arith.constant 0 : i32
    %c0_i32_1 = arith.constant 0 : i32
    return %c0_i32, %c0_i32_0 : i32, i32
  }
  func.func @transform_5(%arg0: i32) -> (i32, i32) {
    %c0_i32 = arith.constant 0 : i32
    %c0_i32_0 = arith.constant 0 : i32
    %c0_i32_1 = arith.constant 0 : i32
    return %c0_i32, %c0_i32_0 : i32, i32
  }
  func.func @transform_6(%arg0: i32) -> (i32, i32, i32) {
    %c0_i32 = arith.constant 0 : i32
    %c0_i32_0 = arith.constant 0 : i32
    %c0_i32_1 = arith.constant 0 : i32
    return %arg0, %c0_i32, %c0_i32_0 : i32, i32, i32
  }
  func.func @transform_7(%arg0: i32) -> (i32, i32, i32) {
    %c0_i32 = arith.constant 0 : i32
    %c0_i32_0 = arith.constant 0 : i32
    %c0_i32_1 = arith.constant 0 : i32
    return %arg0, %c0_i32, %c0_i32_0 : i32, i32, i32
  }
}

</mosaic_0001>

<llo_original>
// kernel: bahdanau_attention.1
$region0: #{bahdanau_attention.1}
  #allocation0 [shape = 'u32[]', space=smem, size = 0x4, offset = 0x4, fixed_abs, tag = 'smem constant byte address 0x4 - core index']
  #allocation1 [shape = 'u32[144,128]{1,0:T(1,128)}', space=vmem, size = 0x12000, scoped, tag = 'internal scratch']
  %s0 = inlined_call_operand.vmem [shape: bf16[2,1,32], index: 0, kind: input, shape index: {}]
  %s1 = inlined_call_operand.vmem [shape: bf16[2,8,32], index: 1, kind: input, shape index: {}]
  %s2 = inlined_call_operand.vmem [shape: bf16[32,32], index: 2, kind: input, shape index: {}]
  %s3 = inlined_call_operand.vmem [shape: bf16[32,32], index: 3, kind: input, shape index: {}]
  %s4 = inlined_call_operand.vmem [shape: f32[1,32], index: 4, kind: input, shape index: {}]
  %s5 = inlined_call_operand.vmem [shape: f32[1,32], index: 5, kind: input, shape index: {}]
  %s6 = inlined_call_operand.hbm [shape: f32[2,1,32], index: 6, kind: output, shape index: {0}]
  %s7 = inlined_call_operand.hbm [shape: f32[2,1,8], index: 7, kind: output, shape index: {1}]
  %8 = xla_tuple %s6, %s7
  %s9 = sld [smem:[#allocation0]]
  $region42: #{bahdanau_attention.1} parent=0
    _
  %s11 = ssub.s32 1, %s9
  %s12 = scalar_select 0, %s11, %s9
  $region1: #{bahdanau_attention.1} parent=0
    #allocation2 [shape = 'u8[1024]{0}', space=vmem, size = 0x400, scoped, tag = 'output window, operand 0, single buffered']
    #allocation3 [shape = 's32[1]{0}', space=sflag, size = 0x4, scoped, tag = 'scoped memory for bahdanau_attention.1']
    #allocation4 [shape = 'u8[1024]{0}', space=vmem, size = 0x400, scoped, tag = 'output window, operand 1, single buffered']
    #allocation5 [shape = 's32[1]{0}', space=sflag, size = 0x4, scoped, tag = 'scoped memory for bahdanau_attention.1']
    %13 = vsyncpa [#allocation3], 0
    %14 = vsyncpa [#allocation5], 0
    // Predicated region
    $region2: #{bahdanau_attention.1} parent=1 // pred_check
      _
    $region3: #{bahdanau_attention.1} parent=1 // pred_check_branch
      %16 = sbr.rel (0) target = $region5
    $region4: #{bahdanau_attention.1} parent=1 // pred_region
      _
    $region5: #{bahdanau_attention.1} parent=1 // pred_fallthru
      _
    // Predicated region
    $region6: #{bahdanau_attention.1} parent=1 // pred_check
      _
    $region7: #{bahdanau_attention.1} parent=1 // pred_check_branch
      %18 = sbr.rel (0) target = $region9
    $region8: #{bahdanau_attention.1} parent=1 // pred_region
      _
    $region9: #{bahdanau_attention.1} parent=1 // pred_fallthru
      _
    // Predicated region
    $region10: #{bahdanau_attention.1} parent=1 // pred_check
      _
    $region11: #{bahdanau_attention.1} parent=1 // pred_check_branch
      %20 = sbr.rel (0) target = $region13
    $region12: #{bahdanau_attention.1} parent=1 // pred_region
      _
    $region13: #{bahdanau_attention.1} parent=1 // pred_fallthru
      _
    // Predicated region
    $region14: #{bahdanau_attention.1} parent=1 // pred_check
      _
    $region15: #{bahdanau_attention.1} parent=1 // pred_check_branch
      %22 = sbr.rel (0) target = $region17
    $region16: #{bahdanau_attention.1} parent=1 // pred_region
      _
    $region17: #{bahdanau_attention.1} parent=1 // pred_fallthru
      _
    // Predicated region
    $region18: #{bahdanau_attention.1} parent=1 // pred_check
      _
    $region19: #{bahdanau_attention.1} parent=1 // pred_check_branch
      %24 = sbr.rel (0) target = $region21
    $region20: #{bahdanau_attention.1} parent=1 // pred_region
      _
    $region21: #{bahdanau_attention.1} parent=1 // pred_fallthru
      _
    // Predicated region
    $region22: #{bahdanau_attention.1} parent=1 // pred_check
      _
    $region23: #{bahdanau_attention.1} parent=1 // pred_check_branch
      %26 = sbr.rel (0) target = $region25
    $region24: #{bahdanau_attention.1} parent=1 // pred_region
      _
    $region25: #{bahdanau_attention.1} parent=1 // pred_fallthru
      _
    %v28 = vld [vmem:[%s1] sm:$0xf]
    %v29 = vld [vmem:[%s1 + $0x4] sm:$0xf]
    %v30 = vld [vmem:[%s3] sm:$0xf]
    %v31 = vld [vmem:[%s3 + $0x4] sm:$0xf]
    %v32 = vld [vmem:[%s3 + $0x8] sm:$0xf]
    %v33 = vld [vmem:[%s3 + $0xc] sm:$0xf]
    %v36 = vunpack.c.l.b16 %v28
    %v37 = vunpack.c.l.b16 %v29
    %v38 = vpack.c.b16 %v37, %v36
    %v43 = vunpack.c.l.b16 %v30
    %v44 = vunpack.c.l.b16 %v31
    %v45 = vunpack.c.l.b16 %v32
    %v46 = vunpack.c.l.b16 %v33
    %v47 = vpack.c.b16 %v44, %v43
    %v48 = vpack.c.b16 %v46, %v45
    %vm51 = vcmask 261120
    %v53 = vsel %vm51, %v38, 0
    %55 = vmatprep.subr.bf16.mxu0 0
    %56 = vmatpush1.bf16.msra.mxu0 %v47
    %57 = vmatprep.subr.bf16.mxu0 0
    %58 = vmatpush1.bf16.msra.mxu0 %v48
    %59 = vmatprep.subr.bf16.mxu0 0
    %60 = vmatpush1.bf16.msra.mxu0 0
    %61 = vmatprep.subr.bf16.mxu0 0
    %62 = vmatpush1.bf16.msra.mxu0 0
    %63 = vmatprep.subr.bf16.mxu0 0
    %64 = vmatpush1.bf16.msra.mxu0 0
    %65 = vmatprep.subr.bf16.mxu0 0
    %66 = vmatpush1.bf16.msra.mxu0 0
    %67 = vmatprep.subr.bf16.mxu0 0
    %68 = vmatpush1.bf16.msra.mxu0 0
    %69 = vmatprep.subr.bf16.mxu0 0
    %70 = vmatpush1.bf16.msra.mxu0 0
    %71 = vmatprep.subr.bf16.mxu0 0
    %72 = vmatpush1.bf16.msra.mxu0 0
    %73 = vmatprep.subr.bf16.mxu0 0
    %74 = vmatpush1.bf16.msra.mxu0 0
    %75 = vmatprep.subr.bf16.mxu0 0
    %76 = vmatpush1.bf16.msra.mxu0 0
    %77 = vmatprep.subr.bf16.mxu0 0
    %78 = vmatpush1.bf16.msra.mxu0 0
    %79 = vmatprep.subr.bf16.mxu0 0
    %80 = vmatpush1.bf16.msra.mxu0 0
    %81 = vmatprep.subr.bf16.mxu0 0
    %82 = vmatpush1.bf16.msra.mxu0 0
    %83 = vmatprep.subr.bf16.mxu0 0
    %84 = vmatpush1.bf16.msra.mxu0 0
    %85 = vmatprep.subr.bf16.mxu0 0
    %86 = vmatpush1.bf16.msra.mxu0 0
    %87 = vmatprep.mubr.bf16.mxu0 0
    %88 = vmatmul.mubr.bf16.gmra.mrb[0].mxu0 %v53
    %v89 = vpop.f32.mrb[0].mxu0
    %v90 = vadd.f32 0.0, %v89
    %v91 = vpop.f32.mrb[0].mxu0
    %v92 = vpop.f32.mrb[0].mxu0
    %v93 = vadd.f32 0.0, %v92
    %v94 = vpop.f32.mrb[0].mxu0
    %95 = vdwg.mxu0
    %v96 = vld [vmem:[%s0] sm:$0x1]
    %v97 = vld [vmem:[%s0 + $0x1] sm:$0x1]
    %v98 = vld [vmem:[%s2] sm:$0xf]
    %v99 = vld [vmem:[%s2 + $0x4] sm:$0xf]
    %v100 = vld [vmem:[%s2 + $0x8] sm:$0xf]
    %v101 = vld [vmem:[%s2 + $0xc] sm:$0xf]
    %v102 = vld [vmem:[%s4] sm:$0x1]
    %v104 = vlaneseq
    %v105 = vshrl.u32 %v104, 7
    %v106 = vsub.s32 0, %v105
    %v107 = vrot.slane %v102, %v106
    %v112 = vunpack.c.l.s4 1966171168
    %v113 = vunpack.c.0.s8 %v112
    %v114 = vlaneseq
    %v115 = vshrl.u32 %v114, 7
    %v116 = vsub.s32 %v113, %v115
    %v117 = vrot.slane %v96, %v116
    %v119 = vunpack.c.l.s4 1966171168
    %v120 = vunpack.c.0.s8 %v119
    %v121 = vlaneseq
    %v122 = vshrl.u32 %v121, 7
    %v123 = vsub.s32 %v120, %v122
    %v124 = vrot.slane %v117, %v123
    %v126 = vunpack.c.l.s4 1966171168
    %v127 = vunpack.c.0.s8 %v126
    %v128 = vlaneseq
    %v129 = vshrl.u32 %v128, 7
    %v130 = vsub.s32 %v127, %v129
    %v131 = vrot.slane %v97, %v130
    %v133 = vunpack.c.l.s4 1966171168
    %v134 = vunpack.c.0.s8 %v133
    %v135 = vlaneseq
    %v136 = vshrl.u32 %v135, 7
    %v137 = vsub.s32 %v134, %v136
    %v138 = vrot.slane %v131, %v137
    %v139 = vunpack.c.l.b16 %v124
    %v140 = vunpack.c.l.b16 %v138
    %v141 = vrot.slane %v140, 7
    %vm142 = vcmask 1041409
    %v143 = vsel %vm142, %v141, %v139
    %v144 = vpack.c.b16 %v143, %v143
    %v149 = vunpack.c.l.b16 %v98
    %v150 = vunpack.c.l.b16 %v99
    %v151 = vunpack.c.l.b16 %v100
    %v152 = vunpack.c.l.b16 %v101
    %v153 = vpack.c.b16 %v150, %v149
    %v154 = vpack.c.b16 %v152, %v151
    %v158 = vsel %vm51, %v144, 0
    %160 = vmatprep.subr.bf16.mxu0 0
    %161 = vmatpush1.bf16.msra.mxu0 %v153
    %162 = vmatprep.subr.bf16.mxu0 0
    %163 = vmatpush1.bf16.msra.mxu0 %v154
    %164 = vmatprep.subr.bf16.mxu0 0
    %165 = vmatpush1.bf16.msra.mxu0 0
    %166 = vmatprep.subr.bf16.mxu0 0
    %167 = vmatpush1.bf16.msra.mxu0 0
    %168 = vmatprep.subr.bf16.mxu0 0
    %169 = vmatpush1.bf16.msra.mxu0 0
    %170 = vmatprep.subr.bf16.mxu0 0
    %171 = vmatpush1.bf16.msra.mxu0 0
    %172 = vmatprep.subr.bf16.mxu0 0
    %173 = vmatpush1.bf16.msra.mxu0 0
    %174 = vmatprep.subr.bf16.mxu0 0
    %175 = vmatpush1.bf16.msra.mxu0 0
    %176 = vmatprep.subr.bf16.mxu0 0
    %177 = vmatpush1.bf16.msra.mxu0 0
    %178 = vmatprep.subr.bf16.mxu0 0
    %179 = vmatpush1.bf16.msra.mxu0 0
    %180 = vmatprep.subr.bf16.mxu0 0
    %181 = vmatpush1.bf16.msra.mxu0 0
    %182 = vmatprep.subr.bf16.mxu0 0
    %183 = vmatpush1.bf16.msra.mxu0 0
    %184 = vmatprep.subr.bf16.mxu0 0
    %185 = vmatpush1.bf16.msra.mxu0 0
    %186 = vmatprep.subr.bf16.mxu0 0
    %187 = vmatpush1.bf16.msra.mxu0 0
    %188 = vmatprep.subr.bf16.mxu0 0
    %189 = vmatpush1.bf16.msra.mxu0 0
    %190 = vmatprep.subr.bf16.mxu0 0
    %191 = vmatpush1.bf16.msra.mxu0 0
    %192 = vmatprep.mubr.bf16.mxu0 0
    %193 = vmatmul.mubr.bf16.gmra.mrb[0].mxu0 %v158
    %v194 = vpop.f32.mrb[0].mxu0
    %v195 = vadd.f32 %v107, %v194
    %v196 = vpop.f32.mrb[0].mxu0
    %v197 = vpop.f32.mrb[0].mxu0
    %v198 = vpop.f32.mrb[0].mxu0
    %199 = vdwg.mxu0
    %v202 = vunpack.c.l.s4 1966171168
    %v203 = vunpack.c.0.s8 %v202
    %v204 = vlaneseq
    %v205 = vshrl.u32 %v204, 7
    %v206 = vsub.s32 %v203, %v205
    %v207 = vrot.slane %v195, %v206
    %v208 = vcombine.high %v207, %v207
    %v210 = vunpack.c.l.s4 1966171168
    %v211 = vunpack.c.0.s8 %v210
    %v212 = vlaneseq
    %v213 = vshrl.u32 %v212, 7
    %v214 = vsub.s32 %v211, %v213
    %v215 = vrot.slane %v207, %v214
    %v217 = vunpack.c.l.s4 1966171168
    %v218 = vunpack.c.0.s8 %v217
    %v219 = vlaneseq
    %v220 = vshrl.u32 %v219, 7
    %v221 = vsub.s32 %v218, %v220
    %v222 = vrot.slane %v208, %v221
    %v223 = vlaneseq
    %v224 = vshrl.u32 %v223, 7
    %v225 = vsub.s32 0, %v224
    %v226 = vrot.slane %v215, %v225
    %v227 = vlaneseq
    %v228 = vshrl.u32 %v227, 7
    %v229 = vsub.s32 0, %v228
    %v230 = vrot.slane %v222, %v229
    %v233 = vadd.f32 %v90, %v226
    %v234 = vadd.f32 %v93, %v230
    %v235 = vtanh.pop %v233
    %v236 = vtanh.pop %v234
    %v237 = vld [vmem:[%s5] sm:$0x1]
    %v239 = vsel %vm51, %v237, 0
    %v242 = vsel %vm51, %v235, 0
    %244 = vmatprep.subr.mxu0 0.0
    %245 = vmatpush1.xpose.msra.mxu0 %v242
    %246 = vmatprep.subr.mxu0 0.0
    %247 = vmatpush1.xpose.msra.mxu0 0.0
    %248 = vmatprep.subr.mxu0 0.0
    %249 = vmatpush1.xpose.msra.mxu0 0.0
    %250 = vmatprep.subr.mxu0 0.0
    %251 = vmatpush1.xpose.msra.mxu0 0.0
    %252 = vmatprep.subr.mxu0 0.0
    %253 = vmatpush1.xpose.msra.mxu0 0.0
    %254 = vmatprep.subr.mxu0 0.0
    %255 = vmatpush1.xpose.msra.mxu0 0.0
    %256 = vmatprep.subr.mxu0 0.0
    %257 = vmatpush1.xpose.msra.mxu0 0.0
    %258 = vmatprep.subr.mxu0 0.0
    %259 = vmatpush1.xpose.msra.mxu0 0.0
    %260 = vmatprep.subr.mxu0 0.0
    %261 = vmatpush1.xpose.msra.mxu0 0.0
    %262 = vmatprep.subr.mxu0 0.0
    %263 = vmatpush1.xpose.msra.mxu0 0.0
    %264 = vmatprep.subr.mxu0 0.0
    %265 = vmatpush1.xpose.msra.mxu0 0.0
    %266 = vmatprep.subr.mxu0 0.0
    %267 = vmatpush1.xpose.msra.mxu0 0.0
    %268 = vmatprep.subr.mxu0 0.0
    %269 = vmatpush1.xpose.msra.mxu0 0.0
    %270 = vmatprep.subr.mxu0 0.0
    %271 = vmatpush1.xpose.msra.mxu0 0.0
    %272 = vmatprep.subr.mxu0 0.0
    %273 = vmatpush1.xpose.msra.mxu0 0.0
    %274 = vmatprep.subr.mxu0 0.0
    %275 = vmatpush1.xpose.msra.mxu0 0.0
    %276 = vmatprep.subr.mxu0 0.0
    %277 = vmatpush1.xpose.msra.mxu0 0.0
    %278 = vmatprep.subr.mxu0 0.0
    %279 = vmatpush1.xpose.msra.mxu0 0.0
    %280 = vmatprep.subr.mxu0 0.0
    %281 = vmatpush1.xpose.msra.mxu0 0.0
    %282 = vmatprep.subr.mxu0 0.0
    %283 = vmatpush1.xpose.msra.mxu0 0.0
    %284 = vmatprep.subr.mxu0 0.0
    %285 = vmatpush1.xpose.msra.mxu0 0.0
    %286 = vmatprep.subr.mxu0 0.0
    %287 = vmatpush1.xpose.msra.mxu0 0.0
    %288 = vmatprep.subr.mxu0 0.0
    %289 = vmatpush1.xpose.msra.mxu0 0.0
    %290 = vmatprep.subr.mxu0 0.0
    %291 = vmatpush1.xpose.msra.mxu0 0.0
    %292 = vmatprep.subr.mxu0 0.0
    %293 = vmatpush1.xpose.msra.mxu0 0.0
    %294 = vmatprep.subr.mxu0 0.0
    %295 = vmatpush1.xpose.msra.mxu0 0.0
    %296 = vmatprep.subr.mxu0 0.0
    %297 = vmatpush1.xpose.msra.mxu0 0.0
    %298 = vmatprep.subr.mxu0 0.0
    %299 = vmatpush1.xpose.msra.mxu0 0.0
    %300 = vmatprep.subr.mxu0 0.0
    %301 = vmatpush1.xpose.msra.mxu0 0.0
    %302 = vmatprep.subr.mxu0 0.0
    %303 = vmatpush1.xpose.msra.mxu0 0.0
    %304 = vmatprep.subr.mxu0 0.0
    %305 = vmatpush1.xpose.msra.mxu0 0.0
    %306 = vmatprep.subr.mxu0 0.0
    %307 = vmatpush1.xpose.msra.mxu0 0.0
    %308 = vmatprep.mubr.f32.mxu0 0.0
    %309 = vmatmul.mubr.f32.gmra.mrb[0].mxu0 %v239
    %v310 = vpop.f32.mrb[0].mxu0
    %v311 = vadd.f32 0.0, %v310
    %v312 = vpop.f32.mrb[0].mxu0
    %313 = vdwg.mxu0
    %vm314 = vcmask 57344
    %v315 = vsel %vm314, %v311, -inf
    %316 = vmax.xlane.f32.xlu0 %v315
    %v317 = vpop.xlane.xlu0 %316
    %v318 = vsub.f32 %v311, %v317
    %v319 = vmul.f32 %v318, 1.442695
    %v320 = vpow.pop %v319
    %v321 = vsel %vm314, %v320, 0.0
    %322 = vadd.xlane.f32.xlu0 %v321
    %v323 = vpop.xlane.xlu0 %322
    %v324 = vrcp.pop %v323
    %v325 = vmul.f32 %v323, %v324
    %v326 = vsub.f32 2.0, %v325
    %v327 = vmul.f32 %v324, %v326
    %v328 = vmul.f32 %v320, %v327
    %v329 = vpack.c.bf16 %v328, %v328
    %v330 = vld [vmem:[%s1] sm:$0xf]
    %vm331 = vcmask 64512
    %v333 = vsel %vm331, %v329, 0
    %vm335 = vcmask 1043456
    %v337 = vsel %vm335, %v330, 0
    %339 = vmatprep.subr.bf16.mxu0 0
    %340 = vmatpush1.bf16.msra.mxu0 %v337
    %341 = vmatprep.subr.bf16.mxu0 0
    %342 = vmatpush1.bf16.msra.mxu0 0
    %343 = vmatprep.subr.bf16.mxu0 0
    %344 = vmatpush1.bf16.msra.mxu0 0
    %345 = vmatprep.subr.bf16.mxu0 0
    %346 = vmatpush1.bf16.msra.mxu0 0
    %347 = vmatprep.subr.bf16.mxu0 0
    %348 = vmatpush1.bf16.msra.mxu0 0
    %349 = vmatprep.subr.bf16.mxu0 0
    %350 = vmatpush1.bf16.msra.mxu0 0
    %351 = vmatprep.subr.bf16.mxu0 0
    %352 = vmatpush1.bf16.msra.mxu0 0
    %353 = vmatprep.subr.bf16.mxu0 0
    %354 = vmatpush1.bf16.msra.mxu0 0
    %355 = vmatprep.subr.bf16.mxu0 0
    %356 = vmatpush1.bf16.msra.mxu0 0
    %357 = vmatprep.subr.bf16.mxu0 0
    %358 = vmatpush1.bf16.msra.mxu0 0
    %359 = vmatprep.subr.bf16.mxu0 0
    %360 = vmatpush1.bf16.msra.mxu0 0
    %361 = vmatprep.subr.bf16.mxu0 0
    %362 = vmatpush1.bf16.msra.mxu0 0
    %363 = vmatprep.subr.bf16.mxu0 0
    %364 = vmatpush1.bf16.msra.mxu0 0
    %365 = vmatprep.subr.bf16.mxu0 0
    %366 = vmatpush1.bf16.msra.mxu0 0
    %367 = vmatprep.subr.bf16.mxu0 0
    %368 = vmatpush1.bf16.msra.mxu0 0
    %369 = vmatprep.subr.bf16.mxu0 0
    %370 = vmatpush1.bf16.msra.mxu0 0
    %371 = vmatprep.mubr.bf16.mxu0 0
    %372 = vmatmul.mubr.bf16.gmra.mrb[0].mxu0 %v333
    %v373 = vpop.f32.mrb[0].mxu0
    %v374 = vadd.f32 0.0, %v373
    %v375 = vpop.f32.mrb[0].mxu0
    %v376 = vpop.f32.mrb[0].mxu0
    %v377 = vpop.f32.mrb[0].mxu0
    %378 = vdwg.mxu0
    %vm379 = vcmask 253952
    %380 = vst.msk [vmem:[#allocation2] sm:$0x1] %vm379, %v374
    %381 = vst.msk [vmem:[#allocation4] sm:$0x1] %vm314, %v328
    %v383 = vsel %vm51, %v236, 0
    %385 = vmatprep.subr.mxu0 0.0
    %386 = vmatpush1.xpose.msra.mxu0 %v383
    %387 = vmatprep.subr.mxu0 0.0
    %388 = vmatpush1.xpose.msra.mxu0 0.0
    %389 = vmatprep.subr.mxu0 0.0
    %390 = vmatpush1.xpose.msra.mxu0 0.0
    %391 = vmatprep.subr.mxu0 0.0
    %392 = vmatpush1.xpose.msra.mxu0 0.0
    %393 = vmatprep.subr.mxu0 0.0
    %394 = vmatpush1.xpose.msra.mxu0 0.0
    %395 = vmatprep.subr.mxu0 0.0
    %396 = vmatpush1.xpose.msra.mxu0 0.0
    %397 = vmatprep.subr.mxu0 0.0
    %398 = vmatpush1.xpose.msra.mxu0 0.0
    %399 = vmatprep.subr.mxu0 0.0
    %400 = vmatpush1.xpose.msra.mxu0 0.0
    %401 = vmatprep.subr.mxu0 0.0
    %402 = vmatpush1.xpose.msra.mxu0 0.0
    %403 = vmatprep.subr.mxu0 0.0
    %404 = vmatpush1.xpose.msra.mxu0 0.0
    %405 = vmatprep.subr.mxu0 0.0
    %406 = vmatpush1.xpose.msra.mxu0 0.0
    %407 = vmatprep.subr.mxu0 0.0
    %408 = vmatpush1.xpose.msra.mxu0 0.0
    %409 = vmatprep.subr.mxu0 0.0
    %410 = vmatpush1.xpose.msra.mxu0 0.0
    %411 = vmatprep.subr.mxu0 0.0
    %412 = vmatpush1.xpose.msra.mxu0 0.0
    %413 = vmatprep.subr.mxu0 0.0
    %414 = vmatpush1.xpose.msra.mxu0 0.0
    %415 = vmatprep.subr.mxu0 0.0
    %416 = vmatpush1.xpose.msra.mxu0 0.0
    %417 = vmatprep.subr.mxu0 0.0
    %418 = vmatpush1.xpose.msra.mxu0 0.0
    %419 = vmatprep.subr.mxu0 0.0
    %420 = vmatpush1.xpose.msra.mxu0 0.0
    %421 = vmatprep.subr.mxu0 0.0
    %422 = vmatpush1.xpose.msra.mxu0 0.0
    %423 = vmatprep.subr.mxu0 0.0
    %424 = vmatpush1.xpose.msra.mxu0 0.0
    %425 = vmatprep.subr.mxu0 0.0
    %426 = vmatpush1.xpose.msra.mxu0 0.0
    %427 = vmatprep.subr.mxu0 0.0
    %428 = vmatpush1.xpose.msra.mxu0 0.0
    %429 = vmatprep.subr.mxu0 0.0
    %430 = vmatpush1.xpose.msra.mxu0 0.0
    %431 = vmatprep.subr.mxu0 0.0
    %432 = vmatpush1.xpose.msra.mxu0 0.0
    %433 = vmatprep.subr.mxu0 0.0
    %434 = vmatpush1.xpose.msra.mxu0 0.0
    %435 = vmatprep.subr.mxu0 0.0
    %436 = vmatpush1.xpose.msra.mxu0 0.0
    %437 = vmatprep.subr.mxu0 0.0
    %438 = vmatpush1.xpose.msra.mxu0 0.0
    %439 = vmatprep.subr.mxu0 0.0
    %440 = vmatpush1.xpose.msra.mxu0 0.0
    %441 = vmatprep.subr.mxu0 0.0
    %442 = vmatpush1.xpose.msra.mxu0 0.0
    %443 = vmatprep.subr.mxu0 0.0
    %444 = vmatpush1.xpose.msra.mxu0 0.0
    %445 = vmatprep.subr.mxu0 0.0
    %446 = vmatpush1.xpose.msra.mxu0 0.0
    %447 = vmatprep.subr.mxu0 0.0
    %448 = vmatpush1.xpose.msra.mxu0 0.0
    %449 = vmatprep.mubr.f32.mxu0 0.0
    %450 = vmatmul.mubr.f32.gmra.mrb[0].mxu0 %v239
    %v451 = vpop.f32.mrb[0].mxu0
    %v452 = vadd.f32 0.0, %v451
    %v453 = vpop.f32.mrb[0].mxu0
    %454 = vdwg.mxu0
    %v455 = vsel %vm314, %v452, -inf
    %456 = vmax.xlane.f32.xlu0 %v455
    %v457 = vpop.xlane.xlu0 %456
    %v458 = vsub.f32 %v452, %v457
    %v459 = vmul.f32 %v458, 1.442695
    %v460 = vpow.pop %v459
    %v461 = vsel %vm314, %v460, 0.0
    %462 = vadd.xlane.f32.xlu0 %v461
    %v463 = vpop.xlane.xlu0 %462
    %v464 = vrcp.pop %v463
    %v465 = vmul.f32 %v463, %v464
    %v466 = vsub.f32 2.0, %v465
    %v467 = vmul.f32 %v464, %v466
    %v468 = vmul.f32 %v460, %v467
    %v469 = vpack.c.bf16 %v468, %v468
    %s470 = scalar_lea.vmem %s1, 4
    %v471 = vld [vmem:[%s470] sm:$0xf]
    %v473 = vsel %vm331, %v469, 0
    %v476 = vsel %vm335, %v471, 0
    %478 = vmatprep.subr.bf16.mxu0 0
    %479 = vmatpush1.bf16.msra.mxu0 %v476
    %480 = vmatprep.subr.bf16.mxu0 0
    %481 = vmatpush1.bf16.msra.mxu0 0
    %482 = vmatprep.subr.bf16.mxu0 0
    %483 = vmatpush1.bf16.msra.mxu0 0
    %484 = vmatprep.subr.bf16.mxu0 0
    %485 = vmatpush1.bf16.msra.mxu0 0
    %486 = vmatprep.subr.bf16.mxu0 0
    %487 = vmatpush1.bf16.msra.mxu0 0
    %488 = vmatprep.subr.bf16.mxu0 0
    %489 = vmatpush1.bf16.msra.mxu0 0
    %490 = vmatprep.subr.bf16.mxu0 0
    %491 = vmatpush1.bf16.msra.mxu0 0
    %492 = vmatprep.subr.bf16.mxu0 0
    %493 = vmatpush1.bf16.msra.mxu0 0
    %494 = vmatprep.subr.bf16.mxu0 0
    %495 = vmatpush1.bf16.msra.mxu0 0
    %496 = vmatprep.subr.bf16.mxu0 0
    %497 = vmatpush1.bf16.msra.mxu0 0
    %498 = vmatprep.subr.bf16.mxu0 0
    %499 = vmatpush1.bf16.msra.mxu0 0
    %500 = vmatprep.subr.bf16.mxu0 0
    %501 = vmatpush1.bf16.msra.mxu0 0
    %502 = vmatprep.subr.bf16.mxu0 0
    %503 = vmatpush1.bf16.msra.mxu0 0
    %504 = vmatprep.subr.bf16.mxu0 0
    %505 = vmatpush1.bf16.msra.mxu0 0
    %506 = vmatprep.subr.bf16.mxu0 0
    %507 = vmatpush1.bf16.msra.mxu0 0
    %508 = vmatprep.subr.bf16.mxu0 0
    %509 = vmatpush1.bf16.msra.mxu0 0
    %510 = vmatprep.mubr.bf16.mxu0 0
    %511 = vmatmul.mubr.bf16.gmra.mrb[0].mxu0 %v473
    %v512 = vpop.f32.mrb[0].mxu0
    %v513 = vadd.f32 0.0, %v512
    %v514 = vpop.f32.mrb[0].mxu0
    %v515 = vpop.f32.mrb[0].mxu0
    %v516 = vpop.f32.mrb[0].mxu0
    %517 = vdwg.mxu0
    %s518 = scalar_lea.vmem [#allocation2], 1
    %519 = vst.msk [vmem:[%s518] sm:$0x1] %vm379, %v513
    %s520 = scalar_lea.vmem [#allocation4], 1
    %521 = vst.msk [vmem:[%s520] sm:$0x1] %vm314, %v468
    // Predicated region
    $region26: #{bahdanau_attention.1} parent=1 // pred_check
      _
    $region27: #{bahdanau_attention.1} parent=1 // pred_check_branch
      %523 = sbr.rel (0) target = $region29
    $region28: #{bahdanau_attention.1} parent=1 // pred_region
      %s525 = ssub.s32 32, 32
      %526 = vsyncadd [#allocation3], %s525
      %s527 = sshll.u32 [#allocation2], 4
      %s528 = int_to_ptr.vmem [resolvable:$true] %s527
      %533 = dma.vmem_to_hbm [thread:$0]  %s528, 32, %s6, [#allocation3], 16, 16, 1
    $region29: #{bahdanau_attention.1} parent=1 // pred_fallthru
      _
    // Predicated region
    $region30: #{bahdanau_attention.1} parent=1 // pred_check
      _
    $region31: #{bahdanau_attention.1} parent=1 // pred_check_branch
      %535 = sbr.rel (0) target = $region33
    $region32: #{bahdanau_attention.1} parent=1 // pred_region
      %s537 = ssub.s32 32, 32
      %538 = vsyncadd [#allocation5], %s537
      %s539 = sshll.u32 [#allocation4], 4
      %s540 = int_to_ptr.vmem [resolvable:$true] %s539
      %545 = dma.vmem_to_hbm [thread:$0]  %s540, 32, %s7, [#allocation5], 16, 16, 1
    $region33: #{bahdanau_attention.1} parent=1 // pred_fallthru
      _
    // Predicated region
    $region34: #{bahdanau_attention.1} parent=1 // pred_check
      _
    $region35: #{bahdanau_attention.1} parent=1 // pred_check_branch
      %547 = sbr.rel (0) target = $region37
    $region36: #{bahdanau_attention.1} parent=1 // pred_region
      %548 = dma.done [#allocation3], 32
    $region37: #{bahdanau_attention.1} parent=1 // pred_fallthru
      _
    // Predicated region
    $region38: #{bahdanau_attention.1} parent=1 // pred_check
      _
    $region39: #{bahdanau_attention.1} parent=1 // pred_check_branch
      %550 = sbr.rel (0) target = $region41
    $region40: #{bahdanau_attention.1} parent=1 // pred_region
      %551 = dma.done [#allocation5], 32
    $region41: #{bahdanau_attention.1} parent=1 // pred_fallthru
      _
    %552 = vsyncpa [#allocation3], 1
    %553 = vsyncpa [#allocation5], 1

</llo_original>
